<compile_context>
chip_gen: v6e
topology: v6e:2x2x1
jax: 0.10.0
libtpu: 0.0.40
codegen_flags: <defaults>
</compile_context>

<pallas_src>
import jax
import jax.numpy as jnp
from jax.experimental import pallas as pl
from jax.experimental.pallas import tpu as pltpu


def _round_up(x, m):
    return (x + m - 1) // m * m


# --------------------------------------------------------------------------
# Pallas kernel: one (P_tile, K) x (K, Cout_pad) matmul + bias per grid step.
# --------------------------------------------------------------------------
def _conv_mm_kernel(p_ref, w_ref, b_ref, o_ref):
    # p_ref: (1, P_tile, K)   w_ref: (K, Cout_pad)   b_ref: (1, Cout_pad)
    acc = jnp.dot(p_ref[0], w_ref[...], preferred_element_type=jnp.float32)
    # Lane-dense (Cout_pad multiple of 128) full-width store.
    o_ref[0] = (acc + b_ref[...]).astype(o_ref.dtype)


def _conv2d_pallas(x_nchw, weight_oihw, bias, *, stride, padding,
                   compute_dtype=None):
    """Conv2d (NCHW in / NCHW out, matching torch.nn.Conv2d) via Pallas."""
    N, Cin, H, W = x_nchw.shape
    Cout, _, KH, KW = weight_oihw.shape
    Ho = (H + 2 * padding - KH) // stride + 1
    Wo = (W + 2 * padding - KW) // stride + 1
    P = Ho * Wo
    K = KH * KW * Cin

    # ---- glue (layout only): NCHW -> NHWC, pad, merged-K im2col ----
    x = jnp.transpose(x_nchw, (0, 2, 3, 1))  # (N, H, W, Cin)
    x_pad = jnp.pad(x, ((0, 0), (padding, padding), (padding, padding), (0, 0)))
    taps = []
    for kh in range(KH):
        for kw in range(KW):
            taps.append(
                x_pad[:, kh:kh + stride * Ho:stride, kw:kw + stride * Wo:stride, :]
                .reshape(N, P, Cin)
            )
    patches = jnp.concatenate(taps, axis=-1)  # (N, P, K) with K = KH*KW*Cin

    # Weight (Cout, Cin, KH, KW) -> (KH, KW, Cin, Cout) -> (K, Cout); the K
    # ordering (kh, kw, cin) matches the patch concatenation above.
    w = jnp.transpose(weight_oihw, (2, 3, 1, 0)).reshape(K, Cout)

    # Lane-dense output: pad Cout up to a multiple of 128 (sliced off below).
    cout_pad = _round_up(Cout, 128)
    w = jnp.pad(w, ((0, 0), (0, cout_pad - Cout)))
    b2 = jnp.pad(bias.reshape(1, Cout).astype(jnp.float32),
                 ((0, 0), (0, cout_pad - Cout)))

    # Optional bf16 inputs for v6e/v7x MXU peak (f32 accumulation regardless).
    if compute_dtype is not None:
        patches = patches.astype(compute_dtype)
        w = w.astype(compute_dtype)

    # Tile P: biggest tile that comfortably fits VMEM, multiple of 8 (sublane),
    # and gives v7x's two TensorCores a parallel axis even when N == 1.
    P_TILE_MAX = 512
    p_tile = _round_up(P, 8) if P <= P_TILE_MAX else P_TILE_MAX
    p_pad = _round_up(P, p_tile)
    if p_pad != P:
        patches = jnp.pad(patches, ((0, 0), (0, p_pad - P), (0, 0)))
    num_p_blocks = p_pad // p_tile

    out = pl.pallas_call(
        _conv_mm_kernel,
        out_shape=jax.ShapeDtypeStruct((N, p_pad, cout_pad), x_nchw.dtype),
        grid_spec=pltpu.PrefetchScalarGridSpec(
            num_scalar_prefetch=0,
            grid=(N, num_p_blocks),
            in_specs=[
                pl.BlockSpec((1, p_tile, K), lambda n, p: (n, p, 0)),
                pl.BlockSpec((K, cout_pad), lambda n, p: (0, 0)),   # VMEM-resident
                pl.BlockSpec((1, cout_pad), lambda n, p: (0, 0)),   # VMEM-resident
            ],
            out_specs=pl.BlockSpec((1, p_tile, cout_pad), lambda n, p: (n, p, 0)),
        ),
        compiler_params=pltpu.CompilerParams(
            dimension_semantics=("parallel", "parallel")
        ),
    )(patches, w, b2)

    out = out[:, :P, :Cout].reshape(N, Ho, Wo, Cout)
    return jnp.transpose(out, (0, 3, 1, 2))  # back to NCHW


# --------------------------------------------------------------------------
# ConvReg: same branch selection as the PyTorch module.
# --------------------------------------------------------------------------
class ConvReg:
    def __init__(self, s_shape, t_shape, factor=1, key=jax.random.PRNGKey(0),
                 compute_dtype=None):
        s_N, s_C, s_H, s_W = s_shape
        t_N, t_C, t_H, t_W = t_shape
        out_c = t_C // factor
        if s_H == 2 * t_H:
            kh, kw, self.stride, self.padding = 3, 3, 2, 1
        elif s_H * 2 == t_H:
            # TODO(synk): ConvTranspose2d branch not lowered to Pallas here.
            raise NotImplementedError("ConvTranspose2d branch not implemented")
        elif s_H >= t_H:
            kh, kw = 1 + s_H - t_H, 1 + s_W - t_W
            self.stride, self.padding = 1, 0
        else:
            raise NotImplementedError(f"student size {s_H}, teacher size {t_H}")

        self.compute_dtype = compute_dtype

        # Deterministic init mirroring torch.nn.Conv2d defaults
        # (uniform(-bound, bound), bound = 1/sqrt(fan_in)).
        fan_in = s_C * kh * kw
        bound = 1.0 / (fan_in ** 0.5)
        kw_key, kb_key = jax.random.split(key)
        self.weight = jax.random.uniform(
            kw_key, (out_c, s_C, kh, kw), jnp.float32, -bound, bound
        )
        self.bias = jax.random.uniform(kb_key, (out_c,), jnp.float32, -bound, bound)

    def __call__(self, x):
        return _conv2d_pallas(
            x, self.weight, self.bias,
            stride=self.stride, padding=self.padding,
            compute_dtype=self.compute_dtype,
        )


# --------------------------------------------------------------------------
if __name__ == "__main__":
    key = jax.random.PRNGKey(0)
    k_x, k_p, k_x2, k_p2 = jax.random.split(key, 4)

    # Branch 1: student (2, 4, 16, 16), teacher (2, 8, 8, 8)
    # -> s_H == 2 * t_H: Conv2d(4, 8, kernel_size=3, stride=2, padding=1)
    s_shape = (2, 4, 16, 16)
    t_shape = (2, 8, 8, 8)
    x = jax.random.normal(k_x, s_shape, jnp.float32)

    module = ConvReg(s_shape, t_shape, factor=1, key=k_p)
    fwd = jax.jit(module.__call__)
    y = jax.block_until_ready(fwd(x))
    assert y.shape == (2, 8, 8, 8), y.shape

    y_ref = jax.lax.conv_general_dilated(
        x, module.weight,
        window_strides=(module.stride, module.stride),
        padding=[(module.padding, module.padding)] * 2,
        dimension_numbers=("NCHW", "OIHW", "NCHW"),
    ) + module.bias.reshape(1, -1, 1, 1)
    assert jnp.allclose(y, y_ref, atol=1e-5, rtol=1e-5)

    # Branch 2: student (2, 4, 12, 12), teacher (2, 8, 8, 8)
    # -> s_H >= t_H: Conv2d(4, 8, kernel_size=(5, 5), stride=1, padding=0)
    s_shape2 = (2, 4, 12, 12)
    x2 = jax.random.normal(k_x2, s_shape2, jnp.float32)
    module2 = ConvReg(s_shape2, t_shape, factor=1, key=k_p2)
    fwd2 = jax.jit(module2.__call__)
    y2 = jax.block_until_ready(fwd2(x2))
    assert y2.shape == (2, 8, 8, 8), y2.shape

    y2_ref = jax.lax.conv_general_dilated(
        x2, module2.weight,
        window_strides=(1, 1), padding=[(0, 0)] * 2,
        dimension_numbers=("NCHW", "OIHW", "NCHW"),
    ) + module2.bias.reshape(1, -1, 1, 1)
    assert jnp.allclose(y2, y2_ref, atol=1e-5, rtol=1e-5)

    print("KERNEL_OK")
</pallas_src>

<mosaic_0001>
module attributes {stable_mosaic.version = 11 : i64} {
  func.func @_conv_mm_kernel(%arg0: i32, %arg1: i32, %arg2: memref<1x64x36xf32, #tpu.memory_space<vmem>>, %arg3: memref<36x128xf32, #tpu.memory_space<vmem>>, %arg4: memref<1x128xf32, #tpu.memory_space<vmem>>, %arg5: memref<1x64x128xf32, #tpu.memory_space<vmem>>) attributes {dimension_semantics = [#tpu.dimension_semantics<parallel>, #tpu.dimension_semantics<parallel>], iteration_bounds = array<i64: 2, 1>, scalar_prefetch = 0 : i64, scratch_operands = 0 : i64, tpu.core_type = #tpu.core_type<tc>, window_params = [{transform_indices = @transform_0, window_bounds = array<i64: 1, 64, 36>}, {pipeline_mode = #tpu.pipeline_mode<synchronous>, transform_indices = @transform_1, window_bounds = array<i64: 36, 128>}, {pipeline_mode = #tpu.pipeline_mode<synchronous>, transform_indices = @transform_2, window_bounds = array<i64: 1, 128>}, {transform_indices = @transform_3, window_bounds = array<i64: 1, 64, 128>}]} {
    %c0 = arith.constant 0 : index
    %c0_0 = arith.constant 0 : index
    %c0_1 = arith.constant 0 : index
    %0 = vector.load %arg2[%c0, %c0_0, %c0_1] : memref<1x64x36xf32, #tpu.memory_space<vmem>>, vector<1x64x36xf32>
    %1 = vector.shape_cast %0 : vector<1x64x36xf32> to vector<64x36xf32>
    %c0_2 = arith.constant 0 : index
    %c0_3 = arith.constant 0 : index
    %2 = vector.load %arg3[%c0_2, %c0_3] : memref<36x128xf32, #tpu.memory_space<vmem>>, vector<36x128xf32>
    %cst = arith.constant dense<0.000000e+00> : vector<64x128xf32>
    %3 = tpu.matmul %1, %2, %cst {dimension_numbers = #tpu.dot_dimension_numbers<[1], [0], [0], [1], [0, 0, 1, 1], [], []>} : vector<64x36xf32>, vector<36x128xf32>, vector<64x128xf32> -> vector<64x128xf32>
    %c0_4 = arith.constant 0 : index
    %c0_5 = arith.constant 0 : index
    %4 = vector.load %arg4[%c0_4, %c0_5] : memref<1x128xf32, #tpu.memory_space<vmem>>, vector<1x128xf32>
    %5 = vector.broadcast %4 : vector<1x128xf32> to vector<64x128xf32>
    %6 = arith.addf %3, %5 : vector<64x128xf32>
    %c0_6 = arith.constant 0 : index
    %c0_7 = arith.constant 0 : index
    %c0_8 = arith.constant 0 : index
    %7 = vector.load %arg5[%c0_6, %c0_7, %c0_8] : memref<1x64x128xf32, #tpu.memory_space<vmem>>, vector<1x64x128xf32>
    %8 = vector.shape_cast %7 : vector<1x64x128xf32> to vector<64x128xf32>
    %9 = vector.shape_cast %6 : vector<64x128xf32> to vector<1x64x128xf32>
    tpu.vector_store %arg5[%c0_6, %c0_7, %c0_8], %9 {strides = array<i32>} : memref<1x64x128xf32, #tpu.memory_space<vmem>>, vector<1x64x128xf32>,
    return
  }
  func.func @transform_0(%arg0: i32, %arg1: i32) -> (i32, i32, i32) {
    %c0_i32 = arith.constant 0 : i32
    %c0_i32_0 = arith.constant 0 : i32
    return %arg0, %arg1, %c0_i32 : i32, i32, i32
  }
  func.func @transform_1(%arg0: i32, %arg1: i32) -> (i32, i32) {
    %c0_i32 = arith.constant 0 : i32
    %c0_i32_0 = arith.constant 0 : i32
    %c0_i32_1 = arith.constant 0 : i32
    return %c0_i32, %c0_i32_0 : i32, i32
  }
  func.func @transform_2(%arg0: i32, %arg1: i32) -> (i32, i32) {
    %c0_i32 = arith.constant 0 : i32
    %c0_i32_0 = arith.constant 0 : i32
    %c0_i32_1 = arith.constant 0 : i32
    return %c0_i32, %c0_i32_0 : i32, i32
  }
  func.func @transform_3(%arg0: i32, %arg1: i32) -> (i32, i32, i32) {
    %c0_i32 = arith.constant 0 : i32
    %c0_i32_0 = arith.constant 0 : i32
    return %arg0, %arg1, %c0_i32 : i32, i32, i32
  }
}

</mosaic_0001>

<llo_original>
// kernel: a_call__.1
$region0: #{a_call__.1}
  #allocation0 [shape = 'u32[]', space=smem, size = 0x4, offset = 0x4, fixed_abs, tag = 'smem constant byte address 0x4 - core index']
  #allocation1 [shape = 'u32[144,128]{1,0:T(1,128)}', space=vmem, size = 0x12000, scoped, tag = 'internal scratch']
  %s0 = inlined_call_operand.vmem [shape: f32[2,64,36], index: 0, kind: input, shape index: {}]
  %s1 = inlined_call_operand.vmem [shape: f32[36,128], index: 1, kind: input, shape index: {}]
  %s2 = inlined_call_operand.vmem [shape: f32[1,128], index: 2, kind: input, shape index: {}]
  %s3 = inlined_call_operand.vmem [shape: f32[2,64,128], index: 3, kind: output, shape index: {}]
  %s4 = sld [smem:[#allocation0]]
  $region45: #{a_call__.1} parent=0
    _
  %s6 = ssub.s32 1, %s4
  %s7 = scalar_select 0, %s6, %s4
  loop: start=0, step=1, limit=4
  $region2: #{a_call__.1} parent=0 // loop_pre_header
    _
  $region3: #{a_call__.1} parent=0 // loop_header
    %s9 = sphi 0, %s13
    %p10 = scmp.ge.s32.totalorder %s9, 4
    %s16 = sphi 0, %s28
    %s17 = sphi 0, %s24
    %s18 = sphi 0, %s16
    %s19 = sphi 0, %s17
    %s20 = sphi 0, %s18
    %s21 = sphi 0, %s19
    %s33 = sphi 0, %s35
    %s36 = sphi 0, %s33
    %s37 = sphi 0, %s36
    %s53 = sphi 0, %s37
    %s57 = sphi 0, %s57
    %s59 = sphi 0, %s57
    %s60 = sphi 0, %s59
    %s74 = sphi 0, %s60
    %s78 = sphi 0, %s78
    %s80 = sphi 0, %s78
    %s81 = sphi 0, %s80
    %s95 = sphi 0, %s81
    %s103 = sphi 0, %s105
    %s106 = sphi 0, %s103
    %s107 = sphi 0, %s106
    %s123 = sphi 0, %s107
  $region4: #{a_call__.1} parent=0 // loop_header_branch
    %12 = sbr.rel (%p10) target = $region8
  $region5: #{a_call__.1} parent=0 // loop_body
    %s14 = ssub.s32 %s9, 1
    %s15 = ssub.s32 %s9, 2
    %s22 = sadd.s32 1, %s17
    %p23 = scmp.ge.s32.totalorder %s22, 1
    %s24 = scalar_select %p23, 0, %s22
    %s25 = sadd.s32 1, %s16
    %s26 = scalar_select %p23, %s25, %s16
    %p27 = scmp.ge.s32.totalorder %s26, 2
    %s28 = scalar_select %p27, 0, %s26
    %s29 = ssub.s32 %s16, %s28
    %s30 = ssub.s32 %s17, %s24
    %s31 = sor.u32 %s29, %s30
    %p32 = scmp.eq.s32.totalorder %s31, 0
    %s34 = sadd.s32 %s33, 1
    %s35 = scalar_select %p32, %s33, %s34
    %p38 = pneg %p32
    %p39 = scmp.eq.s32.totalorder %s9, 1
    %p40 = por %p38, %p39
    %p41 = scmp.ne.s32.totalorder %s33, %s36
    %p42 = scmp.eq.s32.totalorder %s9, 0
    %p43 = por %p41, %p42
    %p44 = scmp.ne.s32.totalorder %s33, %s36
    %p45 = scmp.eq.s32.totalorder %s14, 1
    %p46 = por %p44, %p45
    %p47 = scmp.ne.s32.totalorder %s36, %s37
    %p48 = scmp.eq.s32.totalorder %s14, 0
    %p49 = por %p47, %p48
    %p50 = scmp.ne.s32.totalorder %s36, %s37
    %p51 = scmp.eq.s32.totalorder %s15, 1
    %p52 = por %p50, %p51
    %p54 = scmp.ne.s32.totalorder %s37, %s53
    %p55 = scmp.eq.s32.totalorder %s15, 0
    %p56 = por %p54, %p55
    %s58 = sadd.s32 %s57, 1
    %p61 = scmp.eq.s32.totalorder %s9, 1
    %p62 = scmp.ne.s32.totalorder %s57, %s59
    %p63 = scmp.eq.s32.totalorder %s9, 0
    %p64 = por %p62, %p63
    %p65 = scmp.ne.s32.totalorder %s57, %s59
    %p66 = scmp.eq.s32.totalorder %s14, 1
    %p67 = por %p65, %p66
    %p68 = scmp.ne.s32.totalorder %s59, %s60
    %p69 = scmp.eq.s32.totalorder %s14, 0
    %p70 = por %p68, %p69
    %p71 = scmp.ne.s32.totalorder %s59, %s60
    %p72 = scmp.eq.s32.totalorder %s15, 1
    %p73 = por %p71, %p72
    %p75 = scmp.ne.s32.totalorder %s60, %s74
    %p76 = scmp.eq.s32.totalorder %s15, 0
    %p77 = por %p75, %p76
    %s79 = sadd.s32 %s78, 1
    %p82 = scmp.eq.s32.totalorder %s9, 1
    %p83 = scmp.ne.s32.totalorder %s78, %s80
    %p84 = scmp.eq.s32.totalorder %s9, 0
    %p85 = por %p83, %p84
    %p86 = scmp.ne.s32.totalorder %s78, %s80
    %p87 = scmp.eq.s32.totalorder %s14, 1
    %p88 = por %p86, %p87
    %p89 = scmp.ne.s32.totalorder %s80, %s81
    %p90 = scmp.eq.s32.totalorder %s14, 0
    %p91 = por %p89, %p90
    %p92 = scmp.ne.s32.totalorder %s80, %s81
    %p93 = scmp.eq.s32.totalorder %s15, 1
    %p94 = por %p92, %p93
    %p96 = scmp.ne.s32.totalorder %s81, %s95
    %p97 = scmp.eq.s32.totalorder %s15, 0
    %p98 = por %p96, %p97
    %s99 = ssub.s32 %s16, %s28
    %s100 = ssub.s32 %s17, %s24
    %s101 = sor.u32 %s99, %s100
    %p102 = scmp.eq.s32.totalorder %s101, 0
    %s104 = sadd.s32 %s103, 1
    %s105 = scalar_select %p102, %s103, %s104
    %p108 = pneg %p102
    %p109 = scmp.eq.s32.totalorder %s9, 1
    %p110 = por %p108, %p109
    %p111 = scmp.ne.s32.totalorder %s103, %s106
    %p112 = scmp.eq.s32.totalorder %s9, 0
    %p113 = por %p111, %p112
    %p114 = scmp.ne.s32.totalorder %s103, %s106
    %p115 = scmp.eq.s32.totalorder %s14, 1
    %p116 = por %p114, %p115
    %p117 = scmp.ne.s32.totalorder %s106, %s107
    %p118 = scmp.eq.s32.totalorder %s14, 0
    %p119 = por %p117, %p118
    %p120 = scmp.ne.s32.totalorder %s106, %s107
    %p121 = scmp.eq.s32.totalorder %s15, 1
    %p122 = por %p120, %p121
    %p124 = scmp.ne.s32.totalorder %s107, %s123
    %p125 = scmp.eq.s32.totalorder %s15, 0
    %p126 = por %p124, %p125
    %p127 = scmp.le.s32.totalorder 1, %s9
    %p128 = scmp.lt.s32.totalorder %s9, 3
    %p129 = pnand %p127, %p128
    %p130 = pneg %p129
    // Predicated region
    $region9: #{a_call__.1} parent=5 // pred_check
      _
    $region10: #{a_call__.1} parent=5 // pred_check_branch
      %132 = sbr.rel (%p129) target = $region12
    $region11: #{a_call__.1} parent=5 // pred_region
      %s133 = ssub.s32 %s9, 1
      // Predicated region
      $region13: #{a_call__.1} parent=11 // pred_check
        %p134 = pneg %p70
      $region14: #{a_call__.1} parent=11 // pred_check_branch
        %136 = sbr.rel (%p134) target = $region16
      $region15: #{a_call__.1} parent=11 // pred_region
        _
      $region16: #{a_call__.1} parent=11 // pred_fallthru
        _
      // Predicated region
      $region17: #{a_call__.1} parent=11 // pred_check
        %p137 = pneg %p91
      $region18: #{a_call__.1} parent=11 // pred_check_branch
        %139 = sbr.rel (%p137) target = $region20
      $region19: #{a_call__.1} parent=11 // pred_region
        _
      $region20: #{a_call__.1} parent=11 // pred_fallthru
        _
    $region12: #{a_call__.1} parent=5 // pred_fallthru
      _
    %p140 = scmp.lt.s32.totalorder %s9, 2
    // Predicated region
    $region21: #{a_call__.1} parent=5 // pred_check
      %p141 = pneg %p140
    $region22: #{a_call__.1} parent=5 // pred_check_branch
      %143 = sbr.rel (%p141) target = $region24
    $region23: #{a_call__.1} parent=5 // pred_region
      // Predicated region
      $region25: #{a_call__.1} parent=23 // pred_check
        %p144 = pneg %p43
      $region26: #{a_call__.1} parent=23 // pred_check_branch
        %146 = sbr.rel (%p144) target = $region28
      $region27: #{a_call__.1} parent=23 // pred_region
        %s147 = smul.u32 8, %s17
        %p148 = scmp.lt.s32.totalorder %s16, 1
        %s149 = scalar_select %p148, %s16, 1
        %p150 = scmp.lt.s32.totalorder %s147, 7
        %s151 = scalar_select %p150, %s147, 7
        %s152 = smul.addr %s149, 8
        %s153 = sadd.s32 %s151, %s152
        %s154 = smul.addr %s153, 8
        %s155 = scalar_lea.vmem %s0, %s154
        %s156 = smul.u32 8, %s17
      $region28: #{a_call__.1} parent=23 // pred_fallthru
        _
    $region24: #{a_call__.1} parent=5 // pred_fallthru
      _
    %p157 = scmp.le.s32.totalorder 1, %s9
    %p158 = scmp.lt.s32.totalorder %s9, 3
    %p159 = pnand %p157, %p158
    %p160 = pneg %p159
    // Predicated region
    $region29: #{a_call__.1} parent=5 // pred_check
      _
    $region30: #{a_call__.1} parent=5 // pred_check_branch
      %162 = sbr.rel (%p159) target = $region32
    $region31: #{a_call__.1} parent=5 // pred_region
      %s163 = ssub.s32 %s9, 1
      %s164 = smul.u32 8, %s19
      %p165 = scmp.lt.s32.totalorder %s18, 1
      %s166 = scalar_select %p165, %s18, 1
      %p167 = scmp.lt.s32.totalorder %s164, 7
      %s168 = scalar_select %p167, %s164, 7
      %s169 = smul.addr %s166, 8
      %s170 = sadd.s32 %s168, %s169
      %s171 = smul.addr %s170, 8
      %s172 = scalar_lea.vmem %s0, %s171
      %p173 = pneg %p49
      %p174 = pneg %p46
      %p175 = pneg %p70
      %p176 = pneg %p67
      %p177 = pneg %p91
      %p178 = pneg %p88
      %p179 = pneg %p119
      %p180 = pneg %p116
      %s181 = smul.u32 8, %s19
      %p182 = scmp.lt.s32.totalorder %s18, 1
      %s183 = scalar_select %p182, %s18, 1
      %p184 = scmp.lt.s32.totalorder %s181, 7
      %s185 = scalar_select %p184, %s181, 7
      %s186 = smul.addr %s183, 8
      %s187 = sadd.s32 %s185, %s186
      %s188 = smul.addr %s187, 8
      %s189 = scalar_lea.vmem %s3, %s188
      %s190 = smul.u32 8, %s19
      %p191 = scmp.lt.s32.totalorder %s18, 1
      %s192 = scalar_select %p191, %s18, 1
      %p193 = scmp.lt.s32.totalorder %s190, 7
      %s194 = scalar_select %p193, %s190, 7
      %s195 = smul.addr %s192, 8
      %s196 = sadd.s32 %s194, %s195
      %s197 = smul.addr %s196, 8
      %s198 = scalar_lea.vmem %s0, %s197
      %s199 = smul.u32 8, %s19
      %s200 = smul.u32 8, %s19
      %p201 = scmp.lt.s32.totalorder %s18, 1
      %s202 = scalar_select %p201, %s18, 1
      %p203 = scmp.lt.s32.totalorder %s200, 7
      %s204 = scalar_select %p203, %s200, 7
      %s205 = smul.addr %s202, 8
      %s206 = sadd.s32 %s204, %s205
      %s207 = smul.addr %s206, 8
      %s208 = scalar_lea.vmem %s3, %s207
      %s209 = smul.u32 8, %s19
      %v210 = vld [vmem:[%s198] sm:$0xff]
      %v211 = vld [vmem:[%s198 + $0x8] sm:$0xff]
      %v212 = vld [vmem:[%s198 + $0x10] sm:$0xff]
      %v213 = vld [vmem:[%s198 + $0x18] sm:$0xff]
      %v214 = vld [vmem:[%s198 + $0x20] sm:$0xff]
      %v215 = vld [vmem:[%s198 + $0x28] sm:$0xff]
      %v216 = vld [vmem:[%s198 + $0x30] sm:$0xff]
      %v217 = vld [vmem:[%s198 + $0x38] sm:$0xff]
      %v218 = vld [vmem:[%s1] sm:$0xff]
      %v219 = vld [vmem:[%s1 + $0x8] sm:$0xff]
      %v220 = vld [vmem:[%s1 + $0x10] sm:$0xff]
      %v221 = vld [vmem:[%s1 + $0x18] sm:$0xff]
      %v222 = vld [vmem:[%s1 + $0x20] sm:$0xf]
      %v223 = vld [vmem:[%s2] sm:$0x1]
      %v225 = vlaneseq
      %v226 = vshrl.u32 %v225, 7
      %v227 = vsub.s32 0, %v226
      %v228 = vrot.slane %v223, %v227
      %vm230 = vcmask 293888
      %v232 = vsel %vm230, %v210, 0
      %v235 = vsel %vm230, %v211, 0
      %v238 = vsel %vm230, %v212, 0
      %v241 = vsel %vm230, %v213, 0
      %v244 = vsel %vm230, %v214, 0
      %v247 = vsel %vm230, %v215, 0
      %v250 = vsel %vm230, %v216, 0
      %v253 = vsel %vm230, %v217, 0
      %vm255 = vcmask 1043456
      %v257 = vsel %vm255, %v222, 0
      %259 = vmatprep.subr.mxu0 0.0
      %260 = vmatpush1.msra.mxu0 0.0
      %261 = vmatprep.subr.mxu0 0.0
      %262 = vmatpush1.msra.mxu0 0.0
      %263 = vmatprep.subr.mxu0 0.0
      %264 = vmatpush1.msra.mxu0 0.0
      %265 = vmatprep.subr.mxu0 0.0
      %266 = vmatpush1.msra.mxu0 0.0
      %267 = vmatprep.subr.mxu0 0.0
      %268 = vmatpush1.msra.mxu0 0.0
      %269 = vmatprep.subr.mxu0 0.0
      %270 = vmatpush1.msra.mxu0 0.0
      %271 = vmatprep.subr.mxu0 0.0
      %272 = vmatpush1.msra.mxu0 0.0
      %273 = vmatprep.subr.mxu0 0.0
      %274 = vmatpush1.msra.mxu0 0.0
      %275 = vmatprep.subr.mxu0 0.0
      %276 = vmatpush1.msra.mxu0 0.0
      %277 = vmatprep.subr.mxu0 0.0
      %278 = vmatpush1.msra.mxu0 0.0
      %279 = vmatprep.subr.mxu0 0.0
      %280 = vmatpush1.msra.mxu0 0.0
      %281 = vmatprep.subr.mxu0 0.0
      %282 = vmatpush1.msra.mxu0 %v257
      %283 = vmatprep.subr.mxu0 0.0
      %284 = vmatpush1.msra.mxu0 %v221
      %285 = vmatprep.subr.mxu0 0.0
      %286 = vmatpush1.msra.mxu0 %v220
      %287 = vmatprep.subr.mxu0 0.0
      %288 = vmatpush1.msra.mxu0 %v219
      %289 = vmatprep.subr.mxu0 0.0
      %290 = vmatpush1.msra.mxu0 %v218
      %291 = vmatprep.subr.mxu0 0.0
      %292 = vmatpush2.msra.mxu0 0.0
      %293 = vmatprep.subr.mxu0 0.0
      %294 = vmatpush2.msra.mxu0 0.0
      %295 = vmatprep.subr.mxu0 0.0
      %296 = vmatpush2.msra.mxu0 0.0
      %297 = vmatprep.subr.mxu0 0.0
      %298 = vmatpush2.msra.mxu0 0.0
      %299 = vmatprep.subr.mxu0 0.0
      %300 = vmatpush2.msra.mxu0 0.0
      %301 = vmatprep.subr.mxu0 0.0
      %302 = vmatpush2.msra.mxu0 0.0
      %303 = vmatprep.subr.mxu0 0.0
      %304 = vmatpush2.msra.mxu0 0.0
      %305 = vmatprep.subr.mxu0 0.0
      %306 = vmatpush2.msra.mxu0 0.0
      %307 = vmatprep.subr.mxu0 0.0
      %308 = vmatpush2.msra.mxu0 0.0
      %309 = vmatprep.subr.mxu0 0.0
      %310 = vmatpush2.msra.mxu0 0.0
      %311 = vmatprep.subr.mxu0 0.0
      %312 = vmatpush2.msra.mxu0 0.0
      %313 = vmatprep.subr.mxu0 0.0
      %314 = vmatpush2.msra.mxu0 0.0
      %315 = vmatprep.subr.mxu0 0.0
      %316 = vmatpush2.msra.mxu0 0.0
      %317 = vmatprep.subr.mxu0 0.0
      %318 = vmatpush2.msra.mxu0 0.0
      %319 = vmatprep.subr.mxu0 0.0
      %320 = vmatpush2.msra.mxu0 0.0
      %321 = vmatprep.subr.mxu0 0.0
      %322 = vmatpush2.msra.mxu0 0.0
      %323 = vmatprep.mubr.f32.mxu0 0.0
      %324 = vmatmul.mubr.f32.gmra.mxu0 %v232
      %v325 = vpop.f32.mrf.mxu0
      %v326 = vadd.f32 %v228, %v325
      %v327 = vpop.f32.mrf.mxu0
      %328 = vmatprep.mubr.f32.mxu0 0.0
      %329 = vmatmul.mubr.f32.gmra.mxu0 %v235
      %v330 = vpop.f32.mrf.mxu0
      %v331 = vadd.f32 %v228, %v330
      %v332 = vpop.f32.mrf.mxu0
      %333 = vmatprep.mubr.f32.mxu0 0.0
      %334 = vmatmul.mubr.f32.gmra.mxu0 %v238
      %v335 = vpop.f32.mrf.mxu0
      %v336 = vadd.f32 %v228, %v335
      %v337 = vpop.f32.mrf.mxu0
      %338 = vmatprep.mubr.f32.mxu0 0.0
      %339 = vmatmul.mubr.f32.gmra.mxu0 %v241
      %v340 = vpop.f32.mrf.mxu0
      %v341 = vadd.f32 %v228, %v340
      %v342 = vpop.f32.mrf.mxu0
      %343 = vmatprep.mubr.f32.mxu0 0.0
      %344 = vmatmul.mubr.f32.gmra.mxu0 %v244
      %v345 = vpop.f32.mrf.mxu0
      %v346 = vadd.f32 %v228, %v345
      %v347 = vpop.f32.mrf.mxu0
      %348 = vmatprep.mubr.f32.mxu0 0.0
      %349 = vmatmul.mubr.f32.gmra.mxu0 %v247
      %v350 = vpop.f32.mrf.mxu0
      %v351 = vadd.f32 %v228, %v350
      %v352 = vpop.f32.mrf.mxu0
      %353 = vmatprep.mubr.f32.mxu0 0.0
      %354 = vmatmul.mubr.f32.gmra.mxu0 %v250
      %v355 = vpop.f32.mrf.mxu0
      %v356 = vadd.f32 %v228, %v355
      %v357 = vpop.f32.mrf.mxu0
      %358 = vmatprep.mubr.f32.mxu0 0.0
      %359 = vmatmul.mubr.f32.gmra.mxu0 %v253
      %v360 = vpop.f32.mrf.mxu0
      %v361 = vadd.f32 %v228, %v360
      %v362 = vpop.f32.mrf.mxu0
      %363 = vdwg.mxu0
      %364 = vst [vmem:[%s208] sm:$0xff] %v326
      %365 = vst [vmem:[%s208 + $0x8] sm:$0xff] %v331
      %366 = vst [vmem:[%s208 + $0x10] sm:$0xff] %v336
      %367 = vst [vmem:[%s208 + $0x18] sm:$0xff] %v341
      %368 = vst [vmem:[%s208 + $0x20] sm:$0xff] %v346
      %369 = vst [vmem:[%s208 + $0x28] sm:$0xff] %v351
      %370 = vst [vmem:[%s208 + $0x30] sm:$0xff] %v356
      %371 = vst [vmem:[%s208 + $0x38] sm:$0xff] %v361
      %s372 = smul.u32 8, %s19
      %p373 = scmp.lt.s32.totalorder %s18, 1
      %s374 = scalar_select %p373, %s18, 1
      %p375 = scmp.lt.s32.totalorder %s372, 7
      %s376 = scalar_select %p375, %s372, 7
      %s377 = smul.addr %s374, 8
      %s378 = sadd.s32 %s376, %s377
      %s379 = smul.addr %s378, 8
      %s380 = scalar_lea.vmem %s3, %s379
      // Predicated region
      $region33: #{a_call__.1} parent=31 // pred_check
        %p381 = pneg %p116
      $region34: #{a_call__.1} parent=31 // pred_check_branch
        %383 = sbr.rel (%p381) target = $region36
      $region35: #{a_call__.1} parent=31 // pred_region
        %s384 = smul.u32 8, %s19
      $region36: #{a_call__.1} parent=31 // pred_fallthru
        _
    $region32: #{a_call__.1} parent=5 // pred_fallthru
      _
    %p385 = scmp.le.s32.totalorder 2, %s9
    // Predicated region
    $region37: #{a_call__.1} parent=5 // pred_check
      %p386 = pneg %p385
    $region38: #{a_call__.1} parent=5 // pred_check_branch
      %388 = sbr.rel (%p386) target = $region40
    $region39: #{a_call__.1} parent=5 // pred_region
      %s389 = ssub.s32 %s9, 2
      // Predicated region
      $region41: #{a_call__.1} parent=39 // pred_check
        %p390 = pneg %p122
      $region42: #{a_call__.1} parent=39 // pred_check_branch
        %392 = sbr.rel (%p390) target = $region44
      $region43: #{a_call__.1} parent=39 // pred_region
        %s393 = smul.u32 8, %s21
        %p394 = scmp.lt.s32.totalorder %s20, 1
        %s395 = scalar_select %p394, %s20, 1
        %p396 = scmp.lt.s32.totalorder %s393, 7
        %s397 = scalar_select %p396, %s393, 7
        %s398 = smul.addr %s395, 8
        %s399 = sadd.s32 %s397, %s398
        %s400 = smul.addr %s399, 8
        %s401 = scalar_lea.vmem %s3, %s400
      $region44: #{a_call__.1} parent=39 // pred_fallthru
        _
    $region40: #{a_call__.1} parent=5 // pred_fallthru
      _
  $region6: #{a_call__.1} parent=0 // loop_footer
    %s13 = sadd.s32 1, %s9
  $region7: #{a_call__.1} parent=0 // loop_footer_branch
    %8 = sbr.rel target = $region3
  $region8: #{a_call__.1} parent=0 // loop_exit
    _

</llo_original>
